<compile_context>
chip_gen: v6e
topology: v6e:2x2x1
jax: 0.10.0
libtpu: 0.0.40
codegen_flags: <defaults>
</compile_context>

<pallas_src>
import jax
import jax.numpy as jnp
from jax.experimental import pallas as pl
from jax.experimental.pallas import tpu as pltpu

# ---- model hyperparameters (synthetic, small) ------------------------------
N_MF_FEATURE = 32
N_BP_FEATURE = 48
N_CC_FEATURE = 64
N_HIDDEN = 128
BATCH = 8

K_PAD = 64                      # common padded contraction size per projection
K_FUSED = 3 * K_PAD             # 192
H_FUSED = 3 * N_HIDDEN          # 384


# ---- Pallas kernel: fused (block-diagonal) Linear + ReLU --------------------
def _fused_linear_relu_kernel(x_ref, w_ref, b_ref, o_ref):
    # x_ref: (B, 192), w_ref: (192, 384) block-diagonal, b_ref: (1, 384)
    acc = jnp.dot(x_ref[...], w_ref[...], preferred_element_type=jnp.float32)
    acc = acc + b_ref[...]                       # broadcast (1, 384) over rows
    o_ref[...] = jnp.maximum(acc, 0.0).astype(o_ref.dtype)


def _fused_forward(x_cat, w_fused, b_fused):
    B = x_cat.shape[0]
    return pl.pallas_call(
        _fused_linear_relu_kernel,
        out_shape=jax.ShapeDtypeStruct((B, H_FUSED), x_cat.dtype),
        # Whole-array blocks resident in VMEM; no grid -> no pipeline overhead.
        in_specs=[
            pl.BlockSpec(memory_space=pltpu.MemorySpace.VMEM),
            pl.BlockSpec(memory_space=pltpu.MemorySpace.VMEM),
            pl.BlockSpec(memory_space=pltpu.MemorySpace.VMEM),
        ],
        out_specs=pl.BlockSpec(memory_space=pltpu.MemorySpace.VMEM),
    )(x_cat, w_fused, b_fused)


# ---- Other_Embedding forward ------------------------------------------------
def other_embedding_forward(params, mf_feature, bp_feature, cc_feature):
    # Layout plumbing in the wrapper: zero-pad each input to K_PAD and concat
    # into one lane-friendly (B, 192) operand. Zero padding contributes exactly
    # 0 to the matmul, so semantics are identical to three separate Linears.
    mf_p = jnp.pad(mf_feature, ((0, 0), (0, K_PAD - N_MF_FEATURE)))
    bp_p = jnp.pad(bp_feature, ((0, 0), (0, K_PAD - N_BP_FEATURE)))
    cc_p = jnp.pad(cc_feature, ((0, 0), (0, K_PAD - N_CC_FEATURE)))
    x_cat = jnp.concatenate([mf_p, bp_p, cc_p], axis=1)          # (B, 192)

    y = _fused_forward(x_cat, params["w_fused"], params["b_fused"])  # (B, 384)

    h_mf = y[:, 0 * N_HIDDEN:1 * N_HIDDEN]
    h_bp = y[:, 1 * N_HIDDEN:2 * N_HIDDEN]
    h_cc = y[:, 2 * N_HIDDEN:3 * N_HIDDEN]
    return h_mf, h_bp, h_cc


def init_params(key):
    """Deterministic init matching nn.Linear shapes.

    PyTorch nn.Linear(in, out) stores weight as (out, in); we keep the
    mathematically-equivalent transposed layout (in, out), then assemble the
    three projections into one block-diagonal fused weight (host-side, once).
    """
    ks = jax.random.split(key, 6)

    def uniform(k, shape, fan_in):
        bound = 1.0 / jnp.sqrt(fan_in)
        return jax.random.uniform(k, shape, jnp.float32, -bound, bound)

    mf_w = uniform(ks[0], (N_MF_FEATURE, N_HIDDEN), N_MF_FEATURE)
    mf_b = uniform(ks[1], (N_HIDDEN,), N_MF_FEATURE)
    bp_w = uniform(ks[2], (N_BP_FEATURE, N_HIDDEN), N_BP_FEATURE)
    bp_b = uniform(ks[3], (N_HIDDEN,), N_BP_FEATURE)
    cc_w = uniform(ks[4], (N_CC_FEATURE, N_HIDDEN), N_CC_FEATURE)
    cc_b = uniform(ks[5], (N_HIDDEN,), N_CC_FEATURE)

    # Block-diagonal fused weight (192, 384): each projection occupies its own
    # K_PAD-row / 128-column block; padded rows are zero.
    w_fused = jnp.zeros((K_FUSED, H_FUSED), jnp.float32)
    w_fused = w_fused.at[0:N_MF_FEATURE, 0:N_HIDDEN].set(mf_w)
    w_fused = w_fused.at[K_PAD:K_PAD + N_BP_FEATURE,
                         N_HIDDEN:2 * N_HIDDEN].set(bp_w)
    w_fused = w_fused.at[2 * K_PAD:2 * K_PAD + N_CC_FEATURE,
                         2 * N_HIDDEN:3 * N_HIDDEN].set(cc_w)
    b_fused = jnp.concatenate([mf_b, bp_b, cc_b]).reshape(1, H_FUSED)

    return {
        # per-projection params kept only for the reference check below
        "mf_w": mf_w, "mf_b": mf_b,
        "bp_w": bp_w, "bp_b": bp_b,
        "cc_w": cc_w, "cc_b": cc_b,
        # fused params consumed by the kernel
        "w_fused": w_fused, "b_fused": b_fused,
    }


if __name__ == "__main__":
    key = jax.random.PRNGKey(0)
    kp, k1, k2, k3 = jax.random.split(key, 4)

    params = init_params(kp)
    mf = jax.random.normal(k1, (BATCH, N_MF_FEATURE), jnp.float32)
    bp = jax.random.normal(k2, (BATCH, N_BP_FEATURE), jnp.float32)
    cc = jax.random.normal(k3, (BATCH, N_CC_FEATURE), jnp.float32)

    h_mf, h_bp, h_cc = other_embedding_forward(params, mf, bp, cc)
    jax.block_until_ready((h_mf, h_bp, h_cc))

    # sanity-check against plain-JAX reference (three separate Linear+ReLU)
    ref_mf = jnp.maximum(mf @ params["mf_w"] + params["mf_b"], 0.0)
    ref_bp = jnp.maximum(bp @ params["bp_w"] + params["bp_b"], 0.0)
    ref_cc = jnp.maximum(cc @ params["cc_w"] + params["cc_b"], 0.0)
    assert h_mf.shape == (BATCH, N_HIDDEN)
    assert h_bp.shape == (BATCH, N_HIDDEN)
    assert h_cc.shape == (BATCH, N_HIDDEN)
    assert jnp.allclose(h_mf, ref_mf, atol=1e-5)
    assert jnp.allclose(h_bp, ref_bp, atol=1e-5)
    assert jnp.allclose(h_cc, ref_cc, atol=1e-5)

    print("KERNEL_OK")
</pallas_src>

<mosaic_0001>
module attributes {stable_mosaic.version = 11 : i64} {
  func.func @_fused_linear_relu_kernel(%arg0: memref<8x192xf32, #tpu.memory_space<vmem>>, %arg1: memref<192x384xf32, #tpu.memory_space<vmem>>, %arg2: memref<1x384xf32, #tpu.memory_space<vmem>>, %arg3: memref<8x384xf32, #tpu.memory_space<vmem>>) attributes {dimension_semantics = [], scalar_prefetch = 0 : i64, scratch_operands = 0 : i64, tpu.core_type = #tpu.core_type<tc>} {
    %c0 = arith.constant 0 : index
    %c0_0 = arith.constant 0 : index
    %0 = vector.load %arg0[%c0, %c0_0] : memref<8x192xf32, #tpu.memory_space<vmem>>, vector<8x192xf32>
    %c0_1 = arith.constant 0 : index
    %c0_2 = arith.constant 0 : index
    %1 = vector.load %arg1[%c0_1, %c0_2] : memref<192x384xf32, #tpu.memory_space<vmem>>, vector<192x384xf32>
    %cst = arith.constant dense<0.000000e+00> : vector<8x384xf32>
    %2 = tpu.matmul %0, %1, %cst {dimension_numbers = #tpu.dot_dimension_numbers<[1], [0], [0], [1], [0, 0, 1, 1], [], []>} : vector<8x192xf32>, vector<192x384xf32>, vector<8x384xf32> -> vector<8x384xf32>
    %c0_3 = arith.constant 0 : index
    %c0_4 = arith.constant 0 : index
    %3 = vector.load %arg2[%c0_3, %c0_4] : memref<1x384xf32, #tpu.memory_space<vmem>>, vector<1x384xf32>
    %4 = vector.broadcast %3 : vector<1x384xf32> to vector<8x384xf32>
    %5 = arith.addf %2, %4 : vector<8x384xf32>
    %cst_5 = arith.constant 0.000000e+00 : f32
    %6 = vector.broadcast %cst_5 : f32 to vector<8x384xf32>
    %7 = arith.maximumf %5, %6 : vector<8x384xf32>
    %c0_6 = arith.constant 0 : index
    %c0_7 = arith.constant 0 : index
    %8 = vector.load %arg3[%c0_6, %c0_7] : memref<8x384xf32, #tpu.memory_space<vmem>>, vector<8x384xf32>
    tpu.vector_store %arg3[%c0_6, %c0_7], %7 {strides = array<i32>} : memref<8x384xf32, #tpu.memory_space<vmem>>, vector<8x384xf32>,
    return
  }
}

</mosaic_0001>

<llo_original>
// kernel: tpu_custom_call.1
$region0: #{tpu_custom_call.1}
  #allocation0 [shape = 'u32[]', space=smem, size = 0x4, offset = 0x4, fixed_abs, tag = 'smem constant byte address 0x4 - core index']
  #allocation1 [shape = 'u32[144,128]{1,0:T(1,128)}', space=vmem, size = 0x12000, scoped, tag = 'internal scratch']
  %s0 = inlined_call_operand.hbm [shape: f32[8,192], index: 0, kind: input, shape index: {}]
  %s1 = inlined_call_operand.hbm [shape: f32[192,384], index: 1, kind: input, shape index: {}]
  %s2 = inlined_call_operand.vmem [shape: f32[1,384], index: 2, kind: input, shape index: {}]
  %s3 = inlined_call_operand.hbm [shape: f32[8,384], index: 3, kind: output, shape index: {}]
  %s4 = sld [smem:[#allocation0]]
  $region30: #{tpu_custom_call.1} parent=0
    _
  %s6 = ssub.s32 1, %s4
  %s7 = scalar_select 0, %s6, %s4
  $region1: #{tpu_custom_call.1} parent=0
    #allocation2 [shape = 'u8[8192]{0}', space=vmem, size = 0x2000, scoped, tag = 'input window, operand 0, single buffered']
    #allocation3 [shape = 's32[1]{0}', space=sflag, size = 0x4, scoped, tag = 'scoped memory for tpu_custom_call.1']
    #allocation4 [shape = 's32[1]{0}', space=sflag, size = 0x4, scoped, tag = 'scoped memory for tpu_custom_call.1']
    #allocation5 [shape = 'u8[294912]{0}', space=vmem, size = 0x48000, scoped, tag = 'input window, operand 1, single buffered']
    #allocation6 [shape = 's32[1]{0}', space=sflag, size = 0x4, scoped, tag = 'scoped memory for tpu_custom_call.1']
    #allocation7 [shape = 'u8[12288]{0}', space=vmem, size = 0x3000, scoped, tag = 'output window, operand 0, single buffered']
    %8 = vsyncpa [#allocation3], 0
    %9 = vsyncpa [#allocation6], 0
    %10 = vsyncpa [#allocation4], 0
    // Predicated region
    $region2: #{tpu_custom_call.1} parent=1 // pred_check
      _
    $region3: #{tpu_custom_call.1} parent=1 // pred_check_branch
      %12 = sbr.rel (0) target = $region5
    $region4: #{tpu_custom_call.1} parent=1 // pred_region
      %s14 = ssub.s32 256, 256
      %15 = vsyncadd [#allocation3], %s14
      %s17 = sshll.u32 [#allocation2], 4
      %s18 = int_to_ptr.vmem [resolvable:$true] %s17
      %20 = dma.hbm_to_vmem [thread:$0]  %s0, 256, %s18, [#allocation3]
    $region5: #{tpu_custom_call.1} parent=1 // pred_fallthru
      _
    // Predicated region
    $region6: #{tpu_custom_call.1} parent=1 // pred_check
      _
    $region7: #{tpu_custom_call.1} parent=1 // pred_check_branch
      %22 = sbr.rel (0) target = $region9
    $region8: #{tpu_custom_call.1} parent=1 // pred_region
      %s24 = ssub.s32 9216, 9216
      %25 = vsyncadd [#allocation6], %s24
      %s26 = sshll.u32 [#allocation5], 4
      %s27 = int_to_ptr.vmem [resolvable:$true] %s26
      %32 = dma.hbm_to_vmem [thread:$0]  %s1, 9216, %s27, [#allocation6], 384, 384, 24
    $region9: #{tpu_custom_call.1} parent=1 // pred_fallthru
      _
    // Predicated region
    $region10: #{tpu_custom_call.1} parent=1 // pred_check
      _
    $region11: #{tpu_custom_call.1} parent=1 // pred_check_branch
      %34 = sbr.rel (0) target = $region13
    $region12: #{tpu_custom_call.1} parent=1 // pred_region
      _
    $region13: #{tpu_custom_call.1} parent=1 // pred_fallthru
      _
    // Predicated region
    $region14: #{tpu_custom_call.1} parent=1 // pred_check
      _
    $region15: #{tpu_custom_call.1} parent=1 // pred_check_branch
      %36 = sbr.rel (0) target = $region17
    $region16: #{tpu_custom_call.1} parent=1 // pred_region
      %37 = dma.done [#allocation3], 256
    $region17: #{tpu_custom_call.1} parent=1 // pred_fallthru
      _
    // Predicated region
    $region18: #{tpu_custom_call.1} parent=1 // pred_check
      _
    $region19: #{tpu_custom_call.1} parent=1 // pred_check_branch
      %39 = sbr.rel (0) target = $region21
    $region20: #{tpu_custom_call.1} parent=1 // pred_region
      %40 = dma.done [#allocation6], 9216
    $region21: #{tpu_custom_call.1} parent=1 // pred_fallthru
      _
    %v41 = vld [vmem:[#allocation2] sm:$0xff]
    %v42 = vld [vmem:[#allocation2 + $0x8] sm:$0xff]
    %v43 = vld [vmem:[#allocation5] sm:$0xff]
    %v44 = vld [vmem:[#allocation5 + $0x8] sm:$0xff]
    %v45 = vld [vmem:[#allocation5 + $0x10] sm:$0xff]
    %v46 = vld [vmem:[#allocation5 + $0x18] sm:$0xff]
    %v47 = vld [vmem:[#allocation5 + $0x20] sm:$0xff]
    %v48 = vld [vmem:[#allocation5 + $0x28] sm:$0xff]
    %v49 = vld [vmem:[#allocation5 + $0x30] sm:$0xff]
    %v50 = vld [vmem:[#allocation5 + $0x38] sm:$0xff]
    %v51 = vld [vmem:[#allocation5 + $0x40] sm:$0xff]
    %v52 = vld [vmem:[#allocation5 + $0x48] sm:$0xff]
    %v53 = vld [vmem:[#allocation5 + $0x50] sm:$0xff]
    %v54 = vld [vmem:[#allocation5 + $0x58] sm:$0xff]
    %v55 = vld [vmem:[#allocation5 + $0x60] sm:$0xff]
    %v56 = vld [vmem:[#allocation5 + $0x68] sm:$0xff]
    %v57 = vld [vmem:[#allocation5 + $0x70] sm:$0xff]
    %v58 = vld [vmem:[#allocation5 + $0x78] sm:$0xff]
    %v59 = vld [vmem:[#allocation5 + $0x80] sm:$0xff]
    %v60 = vld [vmem:[#allocation5 + $0x88] sm:$0xff]
    %v61 = vld [vmem:[#allocation5 + $0x90] sm:$0xff]
    %v62 = vld [vmem:[#allocation5 + $0x98] sm:$0xff]
    %v63 = vld [vmem:[#allocation5 + $0xa0] sm:$0xff]
    %v64 = vld [vmem:[#allocation5 + $0xa8] sm:$0xff]
    %v65 = vld [vmem:[#allocation5 + $0xb0] sm:$0xff]
    %v66 = vld [vmem:[#allocation5 + $0xb8] sm:$0xff]
    %v67 = vld [vmem:[#allocation5 + $0xc0] sm:$0xff]
    %v68 = vld [vmem:[#allocation5 + $0xc8] sm:$0xff]
    %v69 = vld [vmem:[#allocation5 + $0xd0] sm:$0xff]
    %v70 = vld [vmem:[#allocation5 + $0xd8] sm:$0xff]
    %v71 = vld [vmem:[#allocation5 + $0xe0] sm:$0xff]
    %v72 = vld [vmem:[#allocation5 + $0xe8] sm:$0xff]
    %v73 = vld [vmem:[#allocation5 + $0xf0] sm:$0xff]
    %v74 = vld [vmem:[#allocation5 + $0xf8] sm:$0xff]
    %v75 = vld [vmem:[#allocation5 + $0x100] sm:$0xff]
    %v76 = vld [vmem:[#allocation5 + $0x108] sm:$0xff]
    %v77 = vld [vmem:[#allocation5 + $0x110] sm:$0xff]
    %v78 = vld [vmem:[#allocation5 + $0x118] sm:$0xff]
    %v79 = vld [vmem:[#allocation5 + $0x120] sm:$0xff]
    %v80 = vld [vmem:[#allocation5 + $0x128] sm:$0xff]
    %v81 = vld [vmem:[#allocation5 + $0x130] sm:$0xff]
    %v82 = vld [vmem:[#allocation5 + $0x138] sm:$0xff]
    %v83 = vld [vmem:[#allocation5 + $0x140] sm:$0xff]
    %v84 = vld [vmem:[#allocation5 + $0x148] sm:$0xff]
    %v85 = vld [vmem:[#allocation5 + $0x150] sm:$0xff]
    %v86 = vld [vmem:[#allocation5 + $0x158] sm:$0xff]
    %v87 = vld [vmem:[#allocation5 + $0x160] sm:$0xff]
    %v88 = vld [vmem:[#allocation5 + $0x168] sm:$0xff]
    %v89 = vld [vmem:[#allocation5 + $0x170] sm:$0xff]
    %v90 = vld [vmem:[#allocation5 + $0x178] sm:$0xff]
    %v91 = vld [vmem:[#allocation5 + $0x180] sm:$0xff]
    %v92 = vld [vmem:[#allocation5 + $0x188] sm:$0xff]
    %v93 = vld [vmem:[#allocation5 + $0x190] sm:$0xff]
    %v94 = vld [vmem:[#allocation5 + $0x198] sm:$0xff]
    %v95 = vld [vmem:[#allocation5 + $0x1a0] sm:$0xff]
    %v96 = vld [vmem:[#allocation5 + $0x1a8] sm:$0xff]
    %v97 = vld [vmem:[#allocation5 + $0x1b0] sm:$0xff]
    %v98 = vld [vmem:[#allocation5 + $0x1b8] sm:$0xff]
    %v99 = vld [vmem:[#allocation5 + $0x1c0] sm:$0xff]
    %v100 = vld [vmem:[#allocation5 + $0x1c8] sm:$0xff]
    %v101 = vld [vmem:[#allocation5 + $0x1d0] sm:$0xff]
    %v102 = vld [vmem:[#allocation5 + $0x1d8] sm:$0xff]
    %v103 = vld [vmem:[#allocation5 + $0x1e0] sm:$0xff]
    %v104 = vld [vmem:[#allocation5 + $0x1e8] sm:$0xff]
    %v105 = vld [vmem:[#allocation5 + $0x1f0] sm:$0xff]
    %v106 = vld [vmem:[#allocation5 + $0x1f8] sm:$0xff]
    %v107 = vld [vmem:[#allocation5 + $0x200] sm:$0xff]
    %v108 = vld [vmem:[#allocation5 + $0x208] sm:$0xff]
    %v109 = vld [vmem:[#allocation5 + $0x210] sm:$0xff]
    %v110 = vld [vmem:[#allocation5 + $0x218] sm:$0xff]
    %v111 = vld [vmem:[#allocation5 + $0x220] sm:$0xff]
    %v112 = vld [vmem:[#allocation5 + $0x228] sm:$0xff]
    %v113 = vld [vmem:[#allocation5 + $0x230] sm:$0xff]
    %v114 = vld [vmem:[#allocation5 + $0x238] sm:$0xff]
    %v115 = vld [vmem:[%s2] sm:$0x7]
    %v117 = vlaneseq
    %v118 = vshrl.u32 %v117, 7
    %v119 = vsub.s32 0, %v118
    %v120 = vrot.slane %v115, %v119
    %v121 = vlaneseq
    %v122 = vshrl.u32 %v121, 7
    %v123 = vsub.s32 1, %v122
    %v124 = vrot.slane %v115, %v123
    %v125 = vlaneseq
    %v126 = vshrl.u32 %v125, 7
    %v127 = vsub.s32 2, %v126
    %v128 = vrot.slane %v115, %v127
    %vm132 = vcmask 523264
    %v134 = vsel %vm132, %v42, 0
    %136 = vmatprep.subr.mxu0 %v89
    %137 = vmatpush1.msra.mxu0 %v88
    %138 = vmatprep.subr.mxu0 %v86
    %139 = vmatpush1.msra.mxu0 %v85
    %140 = vmatprep.subr.mxu0 %v83
    %141 = vmatpush1.msra.mxu0 %v82
    %142 = vmatprep.subr.mxu0 %v80
    %143 = vmatpush1.msra.mxu0 %v79
    %144 = vmatprep.subr.mxu0 %v77
    %145 = vmatpush1.msra.mxu0 %v76
    %146 = vmatprep.subr.mxu0 %v74
    %147 = vmatpush1.msra.mxu0 %v73
    %148 = vmatprep.subr.mxu0 %v71
    %149 = vmatpush1.msra.mxu0 %v70
    %150 = vmatprep.subr.mxu0 %v68
    %151 = vmatpush1.msra.mxu0 %v67
    %152 = vmatprep.subr.mxu0 %v65
    %153 = vmatpush1.msra.mxu0 %v64
    %154 = vmatprep.subr.mxu0 %v62
    %155 = vmatpush1.msra.mxu0 %v61
    %156 = vmatprep.subr.mxu0 %v59
    %157 = vmatpush1.msra.mxu0 %v58
    %158 = vmatprep.subr.mxu0 %v56
    %159 = vmatpush1.msra.mxu0 %v55
    %160 = vmatprep.subr.mxu0 %v53
    %161 = vmatpush1.msra.mxu0 %v52
    %162 = vmatprep.subr.mxu0 %v50
    %163 = vmatpush1.msra.mxu0 %v49
    %164 = vmatprep.subr.mxu0 %v47
    %165 = vmatpush1.msra.mxu0 %v46
    %166 = vmatprep.subr.mxu0 %v44
    %167 = vmatpush1.msra.mxu0 %v43
    %168 = vmatprep.subr.mxu0 0.0
    %169 = vmatpush2.msra.mxu0 0.0
    %170 = vmatprep.subr.mxu0 0.0
    %171 = vmatpush2.msra.mxu0 0.0
    %172 = vmatprep.subr.mxu0 0.0
    %173 = vmatpush2.msra.mxu0 0.0
    %174 = vmatprep.subr.mxu0 0.0
    %175 = vmatpush2.msra.mxu0 0.0
    %176 = vmatprep.subr.mxu0 0.0
    %177 = vmatpush2.msra.mxu0 0.0
    %178 = vmatprep.subr.mxu0 0.0
    %179 = vmatpush2.msra.mxu0 0.0
    %180 = vmatprep.subr.mxu0 0.0
    %181 = vmatpush2.msra.mxu0 0.0
    %182 = vmatprep.subr.mxu0 0.0
    %183 = vmatpush2.msra.mxu0 0.0
    %184 = vmatprep.subr.mxu0 %v113
    %185 = vmatpush2.msra.mxu0 %v112
    %186 = vmatprep.subr.mxu0 %v110
    %187 = vmatpush2.msra.mxu0 %v109
    %188 = vmatprep.subr.mxu0 %v107
    %189 = vmatpush2.msra.mxu0 %v106
    %190 = vmatprep.subr.mxu0 %v104
    %191 = vmatpush2.msra.mxu0 %v103
    %192 = vmatprep.subr.mxu0 %v101
    %193 = vmatpush2.msra.mxu0 %v100
    %194 = vmatprep.subr.mxu0 %v98
    %195 = vmatpush2.msra.mxu0 %v97
    %196 = vmatprep.subr.mxu0 %v95
    %197 = vmatpush2.msra.mxu0 %v94
    %198 = vmatprep.subr.mxu0 %v92
    %199 = vmatpush2.msra.mxu0 %v91
    %200 = vmatprep.mubr.f32.mxu0 %v134
    %201 = vmatmul.mubr.f32.gmra.mxu0 %v41
    %v202 = vpop.f32.mrf.mxu0
    %v203 = vadd.f32 %v120, %v202
    %v204 = vpop.f32.mrf.mxu0
    %v205 = vadd.f32 %v124, %v204
    %206 = vdwg.mxu0
    %207 = vmatprep.subr.mxu0 0.0
    %208 = vmatpush1.msra.mxu0 %v90
    %209 = vmatprep.subr.mxu0 0.0
    %210 = vmatpush1.msra.mxu0 %v87
    %211 = vmatprep.subr.mxu0 0.0
    %212 = vmatpush1.msra.mxu0 %v84
    %213 = vmatprep.subr.mxu0 0.0
    %214 = vmatpush1.msra.mxu0 %v81
    %215 = vmatprep.subr.mxu0 0.0
    %216 = vmatpush1.msra.mxu0 %v78
    %217 = vmatprep.subr.mxu0 0.0
    %218 = vmatpush1.msra.mxu0 %v75
    %219 = vmatprep.subr.mxu0 0.0
    %220 = vmatpush1.msra.mxu0 %v72
    %221 = vmatprep.subr.mxu0 0.0
    %222 = vmatpush1.msra.mxu0 %v69
    %223 = vmatprep.subr.mxu0 0.0
    %224 = vmatpush1.msra.mxu0 %v66
    %225 = vmatprep.subr.mxu0 0.0
    %226 = vmatpush1.msra.mxu0 %v63
    %227 = vmatprep.subr.mxu0 0.0
    %228 = vmatpush1.msra.mxu0 %v60
    %229 = vmatprep.subr.mxu0 0.0
    %230 = vmatpush1.msra.mxu0 %v57
    %231 = vmatprep.subr.mxu0 0.0
    %232 = vmatpush1.msra.mxu0 %v54
    %233 = vmatprep.subr.mxu0 0.0
    %234 = vmatpush1.msra.mxu0 %v51
    %235 = vmatprep.subr.mxu0 0.0
    %236 = vmatpush1.msra.mxu0 %v48
    %237 = vmatprep.subr.mxu0 0.0
    %238 = vmatpush1.msra.mxu0 %v45
    %239 = vmatprep.subr.mxu0 0.0
    %240 = vmatpush2.msra.mxu0 0.0
    %241 = vmatprep.subr.mxu0 0.0
    %242 = vmatpush2.msra.mxu0 0.0
    %243 = vmatprep.subr.mxu0 0.0
    %244 = vmatpush2.msra.mxu0 0.0
    %245 = vmatprep.subr.mxu0 0.0
    %246 = vmatpush2.msra.mxu0 0.0
    %247 = vmatprep.subr.mxu0 0.0
    %248 = vmatpush2.msra.mxu0 0.0
    %249 = vmatprep.subr.mxu0 0.0
    %250 = vmatpush2.msra.mxu0 0.0
    %251 = vmatprep.subr.mxu0 0.0
    %252 = vmatpush2.msra.mxu0 0.0
    %253 = vmatprep.subr.mxu0 0.0
    %254 = vmatpush2.msra.mxu0 0.0
    %255 = vmatprep.subr.mxu0 0.0
    %256 = vmatpush2.msra.mxu0 %v114
    %257 = vmatprep.subr.mxu0 0.0
    %258 = vmatpush2.msra.mxu0 %v111
    %259 = vmatprep.subr.mxu0 0.0
    %260 = vmatpush2.msra.mxu0 %v108
    %261 = vmatprep.subr.mxu0 0.0
    %262 = vmatpush2.msra.mxu0 %v105
    %263 = vmatprep.subr.mxu0 0.0
    %264 = vmatpush2.msra.mxu0 %v102
    %265 = vmatprep.subr.mxu0 0.0
    %266 = vmatpush2.msra.mxu0 %v99
    %267 = vmatprep.subr.mxu0 0.0
    %268 = vmatpush2.msra.mxu0 %v96
    %269 = vmatprep.subr.mxu0 0.0
    %270 = vmatpush2.msra.mxu0 %v93
    %271 = vmatprep.mubr.f32.mxu0 %v134
    %272 = vmatmul.mubr.f32.gmra.mxu0 %v41
    %v273 = vpop.f32.mrf.mxu0
    %v274 = vadd.f32 %v128, %v273
    %v275 = vpop.f32.mrf.mxu0
    %276 = vdwg.mxu0
    %v277 = vmax.f32 %v203, 0.0
    %v278 = vmax.f32 %v205, 0.0
    %v279 = vmax.f32 %v274, 0.0
    %280 = vst [vmem:[#allocation7] sm:$0xff] %v277
    %281 = vst [vmem:[#allocation7 + $0x8] sm:$0xff] %v278
    %282 = vst [vmem:[#allocation7 + $0x10] sm:$0xff] %v279
    // Predicated region
    $region22: #{tpu_custom_call.1} parent=1 // pred_check
      _
    $region23: #{tpu_custom_call.1} parent=1 // pred_check_branch
      %284 = sbr.rel (0) target = $region25
    $region24: #{tpu_custom_call.1} parent=1 // pred_region
      %s286 = ssub.s32 384, 384
      %287 = vsyncadd [#allocation4], %s286
      %s289 = sshll.u32 [#allocation7], 4
      %s290 = int_to_ptr.vmem [resolvable:$true] %s289
      %292 = dma.vmem_to_hbm [thread:$0]  %s290, 384, %s3, [#allocation4]
    $region25: #{tpu_custom_call.1} parent=1 // pred_fallthru
      _
    // Predicated region
    $region26: #{tpu_custom_call.1} parent=1 // pred_check
      _
    $region27: #{tpu_custom_call.1} parent=1 // pred_check_branch
      %294 = sbr.rel (0) target = $region29
    $region28: #{tpu_custom_call.1} parent=1 // pred_region
      %295 = dma.done [#allocation4], 384
    $region29: #{tpu_custom_call.1} parent=1 // pred_fallthru
      _
    %296 = vsyncpa [#allocation3], 1
    %297 = vsyncpa [#allocation6], 1
    %298 = vsyncpa [#allocation4], 1

</llo_original>
